<compile_context>
chip_gen: v6e
topology: v6e:2x2x1
jax: 0.10.0
libtpu: 0.0.40
codegen_flags: <defaults>
</compile_context>

<pallas_src>
import functools

import jax
import jax.numpy as jnp
from jax import lax
from jax.experimental import pallas as pl
from jax.experimental.pallas import tpu as pltpu


def _round_up(x, m):
    return ((x + m - 1) // m) * m


# ---------------------------------------------------------------------------
# Fused row-reduction kernel.
#
# refs layout (inputs first, then outputs; presence depends on do_kl/do_cos):
#   inputs : [s_logits, t_logits] (tile_n, C) if do_kl
#            [s_feats,  t_feats ] (tile_n, D) if do_cos
#   outputs: kl_sum  (1, 1) f32             if do_kl
#            cos_sum (1, 1) f32             if do_cos
# Output blocks map to the same block index on every grid step -> they stay
# resident in VMEM and act as accumulators (init at j==0).
# ---------------------------------------------------------------------------
def _kd_sums_kernel(*refs, scale, eps, n_rows, tile_n, sub_rows, do_kl, do_cos):
    n_in = 2 * int(do_kl) + 2 * int(do_cos)
    ins, outs = refs[:n_in], refs[n_in:]
    idx = 0
    if do_kl:
        sl_ref, tl_ref = ins[idx], ins[idx + 1]
        idx += 2
    if do_cos:
        sf_ref, tf_ref = ins[idx], ins[idx + 1]
        idx += 2

    j = pl.program_id(0)

    @pl.when(j == 0)
    def _():
        for o in outs:
            o[...] = jnp.zeros_like(o)

    base = j * tile_n
    sc = jnp.float32(scale)
    eps_f = jnp.float32(eps)

    def chunk_sums(start):
        # Row mask for the ragged tail (last block may extend past n_rows; the
        # unfetched region of the VMEM buffer is garbage and must never reach
        # the transcendentals).
        row = base + start + lax.broadcasted_iota(jnp.int32, (sub_rows, 1), 0)
        valid = row < n_rows                       # (sub, 1) bool
        validf = valid.astype(jnp.float32)
        parts = []
        if do_kl:
            s = jnp.where(valid, sl_ref[pl.ds(start, sub_rows), :].astype(jnp.float32), 0.0) * sc
            t = jnp.where(valid, tl_ref[pl.ds(start, sub_rows), :].astype(jnp.float32), 0.0) * sc
            s_shift = s - jnp.max(s, axis=-1, keepdims=True)
            t_shift = t - jnp.max(t, axis=-1, keepdims=True)
            s_sum = jnp.sum(jnp.exp(s_shift), axis=-1, keepdims=True)      # (sub,1)
            t_exp = jnp.exp(t_shift)
            t_sum = jnp.sum(t_exp, axis=-1, keepdims=True)                 # (sub,1)
            num = jnp.sum(t_exp * (t_shift - s_shift), axis=-1, keepdims=True)
            inv_t = pl.reciprocal(t_sum, approx=False)
            # Row KL(p_t || p_s) = num / t_sum + log(s_sum / t_sum)
            row_kl = num * inv_t + jnp.log(s_sum * inv_t)
            parts.append(jnp.sum(row_kl * validf, axis=0, keepdims=True))  # (1,1)
        if do_cos:
            sf = jnp.where(valid, sf_ref[pl.ds(start, sub_rows), :].astype(jnp.float32), 0.0)
            tf = jnp.where(valid, tf_ref[pl.ds(start, sub_rows), :].astype(jnp.float32), 0.0)
            dot = jnp.sum(sf * tf, axis=-1, keepdims=True)
            s_n = jnp.sqrt(jnp.sum(sf * sf, axis=-1, keepdims=True))
            t_n = jnp.sqrt(jnp.sum(tf * tf, axis=-1, keepdims=True))
            cos = dot / (jnp.maximum(s_n, eps_f) * jnp.maximum(t_n, eps_f))
            parts.append(jnp.sum(cos * validf, axis=0, keepdims=True))     # (1,1)
        return tuple(parts)

    num_sub = tile_n // sub_rows  # static
    if num_sub == 1:
        totals = chunk_sums(0)
    else:
        def body(r, carry):
            start = pl.multiple_of(r * sub_rows, sub_rows)
            return tuple(c + p for c, p in zip(carry, chunk_sums(start)))
        init = tuple(jnp.zeros((1, 1), jnp.float32) for _ in outs)
        totals = lax.fori_loop(0, num_sub, body, init, unroll=(num_sub <= 8))

    for o, tot in zip(outs, totals):
        o[...] += tot


# ---------------------------------------------------------------------------
# Driver: one pallas_call streaming all needed row-major operands.
# ---------------------------------------------------------------------------
_STEP_BYTES_BUDGET = 8 * 1024 * 1024   # HBM bytes per grid step (all inputs, 1 buffer)
_SUB_ROWS_MAX = 256                    # rows per in-kernel vector pass (vreg pressure)
_SUB_F32_BYTES = 2 * 1024 * 1024       # cap f32 working set per sub-chunk per operand


def _kd_row_sums(scale, eps, s_logits=None, t_logits=None, s_feats=None, t_feats=None,
                 *, do_kl=False, do_cos=False):
    """Returns tuple of f32 scalars: (kl_sum[, cos_sum]) over all rows."""
    inputs, widths = [], []
    n = None
    if do_kl:
        assert s_logits.ndim == 2 and s_logits.shape == t_logits.shape
        inputs += [s_logits, t_logits]
        widths.append(s_logits.shape[1])
        n = s_logits.shape[0]
    if do_cos:
        assert s_feats.ndim == 2 and s_feats.shape == t_feats.shape
        inputs += [s_feats, t_feats]
        widths.append(s_feats.shape[1])
        if n is None:
            n = s_feats.shape[0]
        else:
            assert s_feats.shape[0] == n, "fused path requires matching batch sizes"

    itemsize = max(x.dtype.itemsize for x in inputs)
    bytes_per_row = 2 * sum(widths) * itemsize
    max_width = max(widths)

    # Rows per in-kernel vector pass: keep (sub,1) temporaries and f32 upcasts small.
    sub = _SUB_ROWS_MAX
    while sub > 8 and sub * max_width * 4 > _SUB_F32_BYTES:
        sub //= 2
    sub = max(8, sub)

    if n <= sub:
        sub = _round_up(n, 8)
        tile_n = sub
    else:
        by_budget = max(sub, (_STEP_BYTES_BUDGET // max(1, bytes_per_row)) // sub * sub)
        tile_n = min(by_budget, _round_up(n, sub))
    nt = -(-n // tile_n)

    kernel = functools.partial(
        _kd_sums_kernel, scale=float(scale), eps=float(eps), n_rows=n,
        tile_n=tile_n, sub_rows=sub, do_kl=do_kl, do_cos=do_cos)
    n_out = int(do_kl) + int(do_cos)

    out = pl.pallas_call(
        kernel,
        out_shape=tuple(jax.ShapeDtypeStruct((1, 1), jnp.float32) for _ in range(n_out)),
        grid=(nt,),
        in_specs=[pl.BlockSpec((tile_n, x.shape[1]), lambda j: (j, 0)) for x in inputs],
        out_specs=tuple(pl.BlockSpec((1, 1), lambda j: (0, 0)) for _ in range(n_out)),
        compiler_params=pltpu.CompilerParams(
            # TODO(synk): on v7x a leading CORE_PARALLEL row split would engage both
            # TensorCores; kept a single 'arbitrary' reduction axis for portability.
            dimension_semantics=("arbitrary",),
            vmem_limit_bytes=32 * 1024 * 1024,
        ),
    )(*inputs)
    return tuple(o[0, 0] for o in out)


# ---------------------------------------------------------------------------
# Pure-JAX reference (literal transcription of the PyTorch forward); also used
# as the small-problem fallback path.
# ---------------------------------------------------------------------------
def _kd_loss_ref(classifiers, feats, *, kd_type, temperature, logits_scale):
    kd = kd_type.split("-")
    s_logits, t_logits = classifiers
    s_feats, t_feats = feats
    loss = jnp.float32(0.0)
    if "kld" in kd[0]:
        st = jax.nn.softmax(t_logits.astype(jnp.float32) / temperature * logits_scale, axis=1)
        ls = jax.nn.log_softmax(s_logits.astype(jnp.float32) / temperature * logits_scale, axis=1)
        kl = st * (jnp.log(st) - ls)
        loss = loss + kl.sum(axis=1).mean() * jnp.float32(temperature ** 2)
    if len(kd) > 1 and "cosine" in kd[1]:
        s = s_feats.astype(jnp.float32)
        t = t_feats.astype(jnp.float32)
        num = jnp.sum(s * t, axis=1)
        den = (jnp.maximum(jnp.sqrt(jnp.sum(s * s, axis=1)), 1e-8)
               * jnp.maximum(jnp.sqrt(jnp.sum(t * t, axis=1)), 1e-8))
        loss = loss + (jnp.float32(1.0) - jnp.mean(num / den))
    return loss


# ---------------------------------------------------------------------------
# Module wrapper mirroring KnowledgeDistillationLoss.forward
# ---------------------------------------------------------------------------
class KnowledgeDistillationLoss:
    def __init__(self, kd_type="vanilla", norm_type="input", attention_type="both",
                 temperature=1, logits_scale=1, min_pallas_bytes=64 * 1024):
        self.kd_type = kd_type.split("-")
        self.norm_type = norm_type
        self.attention_type = attention_type
        self.temperature = float(temperature)
        self.logits_scale = float(logits_scale)
        self.min_pallas_bytes = int(min_pallas_bytes)
        self.use_kld = "kld" in self.kd_type[0]
        self.feat_kind = self.kd_type[1] if len(self.kd_type) > 1 else None

    def __call__(self, classifiers, feats):
        s_logits, t_logits = classifiers
        s_feats, t_feats = feats
        do_kl = self.use_kld
        do_cos = self.feat_kind is not None and "cosine" in self.feat_kind
        if self.feat_kind is not None and not do_cos:
            # TODO(synk): 'mse', 'l2' and 'attention' (AttentionTransferLoss) feature paths not ported to Pallas.
            raise NotImplementedError(f"feature loss '{self.feat_kind}' not implemented")

        loss = jnp.float32(0.0)
        if not (do_kl or do_cos):
            return loss

        active = []
        if do_kl:
            active += [s_logits, t_logits]
        if do_cos:
            active += [s_feats, t_feats]
        total_bytes = sum(int(x.size) * x.dtype.itemsize for x in active)
        if total_bytes < self.min_pallas_bytes:
            # Tiny problem: launch/pipeline overhead dominates -> let XLA fuse it.
            return _kd_loss_ref((s_logits, t_logits), (s_feats, t_feats),
                                kd_type="-".join(self.kd_type),
                                temperature=self.temperature,
                                logits_scale=self.logits_scale)

        scale = self.logits_scale / self.temperature
        kl_sum = cos_sum = None
        if do_kl and do_cos and s_logits.shape[0] == s_feats.shape[0]:
            kl_sum, cos_sum = _kd_row_sums(scale, 1e-8, s_logits, t_logits, s_feats, t_feats,
                                           do_kl=True, do_cos=True)
        else:
            if do_kl:
                (kl_sum,) = _kd_row_sums(scale, 1e-8, s_logits=s_logits, t_logits=t_logits,
                                         do_kl=True)
            if do_cos:
                (cos_sum,) = _kd_row_sums(scale, 1e-8, s_feats=s_feats, t_feats=t_feats,
                                          do_cos=True)

        if do_kl:
            n = s_logits.shape[0]
            loss = loss + kl_sum * jnp.float32(self.temperature ** 2) / jnp.float32(n)
        if do_cos:
            b = s_feats.shape[0]
            loss = loss + (jnp.float32(1.0) - cos_sum / jnp.float32(b))
        return loss


if __name__ == "__main__":
    key = jax.random.PRNGKey(0)
    k = jax.random.split(key, 12)
    T, SCALE = 2.0, 1.5

    # --- small shapes, fused Pallas kernel forced (min_pallas_bytes=0) ---
    B, C, D = 8, 32, 64
    s_logits = jax.random.normal(k[0], (B, C), dtype=jnp.float32)
    t_logits = jax.random.normal(k[1], (B, C), dtype=jnp.float32)
    s_feats = jax.random.normal(k[2], (B, D), dtype=jnp.float32)
    t_feats = jax.random.normal(k[3], (B, D), dtype=jnp.float32)

    kd = KnowledgeDistillationLoss("kld-cosine", temperature=T, logits_scale=SCALE,
                                   min_pallas_bytes=0)
    loss = jax.block_until_ready(kd((s_logits, t_logits), (s_feats, t_feats)))
    ref = _kd_loss_ref((s_logits, t_logits), (s_feats, t_feats),
                       kd_type="kld-cosine", temperature=T, logits_scale=SCALE)
    assert jnp.allclose(loss, ref, atol=2e-5, rtol=2e-5), (loss, ref)

    # bf16 inputs (upcast happens inside the kernel, not in the wrapper).
    loss_bf = jax.block_until_ready(kd(
        (s_logits.astype(jnp.bfloat16), t_logits.astype(jnp.bfloat16)),
        (s_feats.astype(jnp.bfloat16), t_feats.astype(jnp.bfloat16))))
    ref_bf = _kd_loss_ref((s_logits.astype(jnp.bfloat16), t_logits.astype(jnp.bfloat16)),
                          (s_feats.astype(jnp.bfloat16), t_feats.astype(jnp.bfloat16)),
                          kd_type="kld-cosine", temperature=T, logits_scale=SCALE)
    assert jnp.allclose(loss_bf, ref_bf, atol=1e-4, rtol=1e-4), (loss_bf, ref_bf)

    # --- ragged batch: exercises in-kernel tail masking + sub-chunk fori_loop ---
    N2, C2, D2 = 300, 100, 72
    sl2 = jax.random.normal(k[4], (N2, C2), dtype=jnp.float32)
    tl2 = jax.random.normal(k[5], (N2, C2), dtype=jnp.float32)
    sf2 = jax.random.normal(k[6], (N2, D2), dtype=jnp.float32)
    tf2 = jax.random.normal(k[7], (N2, D2), dtype=jnp.float32)
    kd2 = KnowledgeDistillationLoss("kld-cosine", temperature=T, logits_scale=SCALE)
    loss2 = jax.block_until_ready(kd2((sl2, tl2), (sf2, tf2)))
    ref2 = _kd_loss_ref((sl2, tl2), (sf2, tf2),
                        kd_type="kld-cosine", temperature=T, logits_scale=SCALE)
    assert jnp.allclose(loss2, ref2, atol=1e-4, rtol=1e-4), (loss2, ref2)

    # --- multi-step grid: several row tiles accumulated along the reduction axis ---
    N3, C3, D3 = 600, 2048, 1024
    sl3 = jax.random.normal(k[8], (N3, C3), dtype=jnp.float32)
    tl3 = jax.random.normal(k[9], (N3, C3), dtype=jnp.float32)
    sf3 = jax.random.normal(k[10], (N3, D3), dtype=jnp.float32)
    tf3 = jax.random.normal(k[11], (N3, D3), dtype=jnp.float32)
    kd3 = KnowledgeDistillationLoss("kld-cosine", temperature=1.0, logits_scale=1.0)
    loss3 = jax.block_until_ready(kd3((sl3, tl3), (sf3, tf3)))
    ref3 = _kd_loss_ref((sl3, tl3), (sf3, tf3),
                        kd_type="kld-cosine", temperature=1.0, logits_scale=1.0)
    assert jnp.allclose(loss3, ref3, atol=2e-4, rtol=2e-4), (loss3, ref3)

    # --- small-problem fallback path (default threshold, tiny inputs -> plain jnp) ---
    kd_fb = KnowledgeDistillationLoss("kld-cosine", temperature=T, logits_scale=SCALE)
    loss_fb = jax.block_until_ready(kd_fb((s_logits, t_logits), (s_feats, t_feats)))
    assert jnp.allclose(loss_fb, ref, atol=2e-5, rtol=2e-5), (loss_fb, ref)

    # --- default 'vanilla' config has no logits or feature loss -> 0.0 ---
    kd_v = KnowledgeDistillationLoss("vanilla")
    assert float(kd_v((s_logits, t_logits), (s_feats, t_feats))) == 0.0

    print("KERNEL_OK")
</pallas_src>

<mosaic_0001>
module attributes {stable_mosaic.version = 11 : i64} {
  func.func @_kd_sums_kernel(%arg0: i32, %arg1: memref<8x32xf32, #tpu.memory_space<vmem>>, %arg2: memref<8x32xf32, #tpu.memory_space<vmem>>, %arg3: memref<8x64xf32, #tpu.memory_space<vmem>>, %arg4: memref<8x64xf32, #tpu.memory_space<vmem>>, %arg5: memref<1x1xf32, #tpu.memory_space<vmem>>, %arg6: memref<1x1xf32, #tpu.memory_space<vmem>>) attributes {dimension_semantics = [#tpu.dimension_semantics<arbitrary>], iteration_bounds = array<i64: 1>, scalar_prefetch = 0 : i64, scratch_operands = 0 : i64, tpu.core_type = #tpu.core_type<tc>, window_params = [{transform_indices = @transform_0, window_bounds = array<i64: 8, 32>}, {transform_indices = @transform_1, window_bounds = array<i64: 8, 32>}, {transform_indices = @transform_2, window_bounds = array<i64: 8, 64>}, {transform_indices = @transform_3, window_bounds = array<i64: 8, 64>}, {pipeline_mode = #tpu.pipeline_mode<synchronous>, transform_indices = @transform_4, window_bounds = array<i64: 1, 1>}, {pipeline_mode = #tpu.pipeline_mode<synchronous>, transform_indices = @transform_5, window_bounds = array<i64: 1, 1>}]} {
    %c0_i32 = arith.constant 0 : i32
    %0 = arith.cmpi eq, %arg0, %c0_i32 : i32
    %1 = arith.extui %0 : i1 to i32
    %c0_i32_0 = arith.constant 0 : i32
    %2 = arith.cmpi ne, %1, %c0_i32_0 : i32
    scf.if %2 {
      %cst_35 = arith.constant 0.000000e+00 : f32
      %88 = vector.broadcast %cst_35 : f32 to vector<1x1xf32>
      %c0_36 = arith.constant 0 : index
      %c0_37 = arith.constant 0 : index
      %89 = vector.load %arg5[%c0_36, %c0_37] : memref<1x1xf32, #tpu.memory_space<vmem>>, vector<1x1xf32>
      tpu.vector_store %arg5[%c0_36, %c0_37], %88 {strides = array<i32>} : memref<1x1xf32, #tpu.memory_space<vmem>>, vector<1x1xf32>,
      %cst_38 = arith.constant 0.000000e+00 : f32
      %90 = vector.broadcast %cst_38 : f32 to vector<1x1xf32>
      %c0_39 = arith.constant 0 : index
      %c0_40 = arith.constant 0 : index
      %91 = vector.load %arg6[%c0_39, %c0_40] : memref<1x1xf32, #tpu.memory_space<vmem>>, vector<1x1xf32>
      tpu.vector_store %arg6[%c0_39, %c0_40], %90 {strides = array<i32>} : memref<1x1xf32, #tpu.memory_space<vmem>>, vector<1x1xf32>,
    } else {
    }
    %c8_i32 = arith.constant 8 : i32
    %3 = arith.muli %arg0, %c8_i32 : i32
    %c0_i32_1 = arith.constant 0 : i32
    %4 = arith.addi %3, %c0_i32_1 : i32
    %5 = tpu.iota {dimensions = array<i32: 0>} : vector<8x1xi32>
    %6 = vector.broadcast %4 : i32 to vector<8x1xi32>
    %7 = arith.addi %6, %5 : vector<8x1xi32>
    %c8_i32_2 = arith.constant 8 : i32
    %8 = vector.broadcast %c8_i32_2 : i32 to vector<8x1xi32>
    %9 = arith.cmpi slt, %7, %8 : vector<8x1xi32>
    %10 = arith.extui %9 : vector<8x1xi1> to vector<8x1xi32>
    %11 = arith.sitofp %10 : vector<8x1xi32> to vector<8x1xf32>
    %c0 = arith.constant 0 : index
    %c0_3 = arith.constant 0 : index
    %12 = vector.load %arg1[%c0, %c0_3] : memref<8x32xf32, #tpu.memory_space<vmem>>, vector<8x32xf32>
    %cst = arith.constant 0.000000e+00 : f32
    %13 = vector.shape_cast %9 : vector<8x1xi1> to vector<8x1xi1>
    %14 = vector.broadcast %13 : vector<8x1xi1> to vector<8x32xi1>
    %15 = vector.broadcast %cst : f32 to vector<8x32xf32>
    %16 = arith.select %14, %12, %15 : vector<8x32xi1>, vector<8x32xf32>
    %cst_4 = arith.constant 7.500000e-01 : f32
    %17 = vector.broadcast %cst_4 : f32 to vector<8x32xf32>
    %18 = arith.mulf %16, %17 : vector<8x32xf32>
    %c0_5 = arith.constant 0 : index
    %c0_6 = arith.constant 0 : index
    %19 = vector.load %arg2[%c0_5, %c0_6] : memref<8x32xf32, #tpu.memory_space<vmem>>, vector<8x32xf32>
    %cst_7 = arith.constant 0.000000e+00 : f32
    %20 = vector.shape_cast %9 : vector<8x1xi1> to vector<8x1xi1>
    %21 = vector.broadcast %20 : vector<8x1xi1> to vector<8x32xi1>
    %22 = vector.broadcast %cst_7 : f32 to vector<8x32xf32>
    %23 = arith.select %21, %19, %22 : vector<8x32xi1>, vector<8x32xf32>
    %cst_8 = arith.constant 7.500000e-01 : f32
    %24 = vector.broadcast %cst_8 : f32 to vector<8x32xf32>
    %25 = arith.mulf %23, %24 : vector<8x32xf32>
    %cst_9 = arith.constant dense<0xFF800000> : vector<8xf32>
    %26 = vector.multi_reduction <maximumf>, %18, %cst_9 [1] : vector<8x32xf32> to vector<8xf32>
    %27 = vector.shape_cast %26 : vector<8xf32> to vector<8x1xf32>
    %28 = vector.broadcast %27 : vector<8x1xf32> to vector<8x32xf32>
    %29 = arith.subf %18, %28 : vector<8x32xf32>
    %cst_10 = arith.constant dense<0xFF800000> : vector<8xf32>
    %30 = vector.multi_reduction <maximumf>, %25, %cst_10 [1] : vector<8x32xf32> to vector<8xf32>
    %31 = vector.shape_cast %30 : vector<8xf32> to vector<8x1xf32>
    %32 = vector.broadcast %31 : vector<8x1xf32> to vector<8x32xf32>
    %33 = arith.subf %25, %32 : vector<8x32xf32>
    %34 = math.exp %29 : vector<8x32xf32>
    %cst_11 = arith.constant dense<0.000000e+00> : vector<8xf32>
    %35 = vector.multi_reduction <add>, %34, %cst_11 [1] : vector<8x32xf32> to vector<8xf32>
    %36 = vector.shape_cast %35 : vector<8xf32> to vector<8x1xf32>
    %37 = math.exp %33 : vector<8x32xf32>
    %cst_12 = arith.constant dense<0.000000e+00> : vector<8xf32>
    %38 = vector.multi_reduction <add>, %37, %cst_12 [1] : vector<8x32xf32> to vector<8xf32>
    %39 = vector.shape_cast %38 : vector<8xf32> to vector<8x1xf32>
    %40 = arith.subf %33, %29 : vector<8x32xf32>
    %41 = arith.mulf %37, %40 : vector<8x32xf32>
    %cst_13 = arith.constant dense<0.000000e+00> : vector<8xf32>
    %42 = vector.multi_reduction <add>, %41, %cst_13 [1] : vector<8x32xf32> to vector<8xf32>
    %43 = vector.shape_cast %42 : vector<8xf32> to vector<8x1xf32>
    %44 = tpu.reciprocal %39 : vector<8x1xf32> -> vector<8x1xf32>
    %45 = arith.mulf %43, %44 : vector<8x1xf32>
    %46 = arith.mulf %36, %44 : vector<8x1xf32>
    %47 = math.log %46 : vector<8x1xf32>
    %48 = arith.addf %45, %47 : vector<8x1xf32>
    %49 = arith.mulf %48, %11 : vector<8x1xf32>
    %cst_14 = arith.constant dense<0.000000e+00> : vector<1xf32>
    %50 = vector.multi_reduction <add>, %49, %cst_14 [0] : vector<8x1xf32> to vector<1xf32>
    %51 = vector.shape_cast %50 : vector<1xf32> to vector<1x1xf32>
    %c0_15 = arith.constant 0 : index
    %c0_16 = arith.constant 0 : index
    %52 = vector.load %arg3[%c0_15, %c0_16] : memref<8x64xf32, #tpu.memory_space<vmem>>, vector<8x64xf32>
    %cst_17 = arith.constant 0.000000e+00 : f32
    %53 = vector.shape_cast %9 : vector<8x1xi1> to vector<8x1xi1>
    %54 = vector.broadcast %53 : vector<8x1xi1> to vector<8x64xi1>
    %55 = vector.broadcast %cst_17 : f32 to vector<8x64xf32>
    %56 = arith.select %54, %52, %55 : vector<8x64xi1>, vector<8x64xf32>
    %c0_18 = arith.constant 0 : index
    %c0_19 = arith.constant 0 : index
    %57 = vector.load %arg4[%c0_18, %c0_19] : memref<8x64xf32, #tpu.memory_space<vmem>>, vector<8x64xf32>
    %cst_20 = arith.constant 0.000000e+00 : f32
    %58 = vector.shape_cast %9 : vector<8x1xi1> to vector<8x1xi1>
    %59 = vector.broadcast %58 : vector<8x1xi1> to vector<8x64xi1>
    %60 = vector.broadcast %cst_20 : f32 to vector<8x64xf32>
    %61 = arith.select %59, %57, %60 : vector<8x64xi1>, vector<8x64xf32>
    %62 = arith.mulf %56, %61 : vector<8x64xf32>
    %cst_21 = arith.constant dense<0.000000e+00> : vector<8xf32>
    %63 = vector.multi_reduction <add>, %62, %cst_21 [1] : vector<8x64xf32> to vector<8xf32>
    %64 = vector.shape_cast %63 : vector<8xf32> to vector<8x1xf32>
    %65 = arith.mulf %56, %56 : vector<8x64xf32>
    %cst_22 = arith.constant dense<0.000000e+00> : vector<8xf32>
    %66 = vector.multi_reduction <add>, %65, %cst_22 [1] : vector<8x64xf32> to vector<8xf32>
    %67 = vector.shape_cast %66 : vector<8xf32> to vector<8x1xf32>
    %68 = math.sqrt %67 : vector<8x1xf32>
    %69 = arith.mulf %61, %61 : vector<8x64xf32>
    %cst_23 = arith.constant dense<0.000000e+00> : vector<8xf32>
    %70 = vector.multi_reduction <add>, %69, %cst_23 [1] : vector<8x64xf32> to vector<8xf32>
    %71 = vector.shape_cast %70 : vector<8xf32> to vector<8x1xf32>
    %72 = math.sqrt %71 : vector<8x1xf32>
    %cst_24 = arith.constant 9.99999993E-9 : f32
    %73 = vector.broadcast %cst_24 : f32 to vector<8x1xf32>
    %74 = arith.maximumf %68, %73 : vector<8x1xf32>
    %cst_25 = arith.constant 9.99999993E-9 : f32
    %75 = vector.broadcast %cst_25 : f32 to vector<8x1xf32>
    %76 = arith.maximumf %72, %75 : vector<8x1xf32>
    %77 = arith.mulf %74, %76 : vector<8x1xf32>
    %78 = arith.divf %64, %77 : vector<8x1xf32>
    %79 = arith.mulf %78, %11 : vector<8x1xf32>
    %cst_26 = arith.constant dense<0.000000e+00> : vector<1xf32>
    %80 = vector.multi_reduction <add>, %79, %cst_26 [0] : vector<8x1xf32> to vector<1xf32>
    %81 = vector.shape_cast %80 : vector<1xf32> to vector<1x1xf32>
    %c0_27 = arith.constant 0 : index
    %c0_28 = arith.constant 0 : index
    %82 = vector.load %arg5[%c0_27, %c0_28] : memref<1x1xf32, #tpu.memory_space<vmem>>, vector<1x1xf32>
    %83 = arith.addf %82, %51 : vector<1x1xf32>
    %c0_29 = arith.constant 0 : index
    %c0_30 = arith.constant 0 : index
    %84 = vector.load %arg5[%c0_29, %c0_30] : memref<1x1xf32, #tpu.memory_space<vmem>>, vector<1x1xf32>
    tpu.vector_store %arg5[%c0_29, %c0_30], %83 {strides = array<i32>} : memref<1x1xf32, #tpu.memory_space<vmem>>, vector<1x1xf32>,
    %c0_31 = arith.constant 0 : index
    %c0_32 = arith.constant 0 : index
    %85 = vector.load %arg6[%c0_31, %c0_32] : memref<1x1xf32, #tpu.memory_space<vmem>>, vector<1x1xf32>
    %86 = arith.addf %85, %81 : vector<1x1xf32>
    %c0_33 = arith.constant 0 : index
    %c0_34 = arith.constant 0 : index
    %87 = vector.load %arg6[%c0_33, %c0_34] : memref<1x1xf32, #tpu.memory_space<vmem>>, vector<1x1xf32>
    tpu.vector_store %arg6[%c0_33, %c0_34], %86 {strides = array<i32>} : memref<1x1xf32, #tpu.memory_space<vmem>>, vector<1x1xf32>,
    return
  }
  func.func @transform_0(%arg0: i32) -> (i32, i32) {
    %c0_i32 = arith.constant 0 : i32
    %c0_i32_0 = arith.constant 0 : i32
    return %arg0, %c0_i32 : i32, i32
  }
  func.func @transform_1(%arg0: i32) -> (i32, i32) {
    %c0_i32 = arith.constant 0 : i32
    %c0_i32_0 = arith.constant 0 : i32
    return %arg0, %c0_i32 : i32, i32
  }
  func.func @transform_2(%arg0: i32) -> (i32, i32) {
    %c0_i32 = arith.constant 0 : i32
    %c0_i32_0 = arith.constant 0 : i32
    return %arg0, %c0_i32 : i32, i32
  }
  func.func @transform_3(%arg0: i32) -> (i32, i32) {
    %c0_i32 = arith.constant 0 : i32
    %c0_i32_0 = arith.constant 0 : i32
    return %arg0, %c0_i32 : i32, i32
  }
  func.func @transform_4(%arg0: i32) -> (i32, i32) {
    %c0_i32 = arith.constant 0 : i32
    %c0_i32_0 = arith.constant 0 : i32
    %c0_i32_1 = arith.constant 0 : i32
    return %c0_i32, %c0_i32_0 : i32, i32
  }
  func.func @transform_5(%arg0: i32) -> (i32, i32) {
    %c0_i32 = arith.constant 0 : i32
    %c0_i32_0 = arith.constant 0 : i32
    %c0_i32_1 = arith.constant 0 : i32
    return %c0_i32, %c0_i32_0 : i32, i32
  }
}

</mosaic_0001>

<llo_original>
// kernel: tpu_custom_call.1
$region0: #{tpu_custom_call.1}
  #allocation0 [shape = 'u32[]', space=smem, size = 0x4, offset = 0x4, fixed_abs, tag = 'smem constant byte address 0x4 - core index']
  #allocation1 [shape = 'u32[144,128]{1,0:T(1,128)}', space=vmem, size = 0x12000, scoped, tag = 'internal scratch']
  %s0 = inlined_call_operand.hbm [shape: f32[8,32], index: 0, kind: input, shape index: {}]
  %s1 = inlined_call_operand.hbm [shape: f32[8,32], index: 1, kind: input, shape index: {}]
  %s2 = inlined_call_operand.hbm [shape: f32[8,64], index: 2, kind: input, shape index: {}]
  %s3 = inlined_call_operand.hbm [shape: f32[8,64], index: 3, kind: input, shape index: {}]
  %s4 = inlined_call_operand.hbm [shape: f32[1,1], index: 4, kind: output, shape index: {0}]
  %s5 = inlined_call_operand.hbm [shape: f32[1,1], index: 5, kind: output, shape index: {1}]
  %6 = xla_tuple %s4, %s5
  %s7 = sld [smem:[#allocation0]]
  $region54: #{tpu_custom_call.1} parent=0
    _
  %s9 = ssub.s32 1, %s7
  %s10 = scalar_select 0, %s9, %s7
  $region1: #{tpu_custom_call.1} parent=0
    #allocation2 [shape = 'u8[4096]{0}', space=vmem, size = 0x1000, scoped, tag = 'input window, operand 0, single buffered']
    #allocation3 [shape = 's32[1]{0}', space=sflag, size = 0x4, scoped, tag = 'scoped memory for tpu_custom_call.1']
    #allocation4 [shape = 's32[1]{0}', space=sflag, size = 0x4, scoped, tag = 'scoped memory for tpu_custom_call.1']
    #allocation5 [shape = 'u8[4096]{0}', space=vmem, size = 0x1000, scoped, tag = 'input window, operand 1, single buffered']
    #allocation6 [shape = 's32[1]{0}', space=sflag, size = 0x4, scoped, tag = 'scoped memory for tpu_custom_call.1']
    #allocation7 [shape = 'u8[4096]{0}', space=vmem, size = 0x1000, scoped, tag = 'input window, operand 2, single buffered']
    #allocation8 [shape = 'u8[4096]{0}', space=vmem, size = 0x1000, scoped, tag = 'input window, operand 3, single buffered']
    #allocation9 [shape = 's32[1]{0}', space=sflag, size = 0x4, scoped, tag = 'scoped memory for tpu_custom_call.1']
    #allocation10 [shape = 'u8[512]{0}', space=vmem, size = 0x400, scoped, tag = 'output window, operand 0, single buffered']
    #allocation11 [shape = 'u8[512]{0}', space=vmem, size = 0x400, scoped, tag = 'output window, operand 1, single buffered']
    #allocation12 [shape = 's32[1]{0}', space=sflag, size = 0x4, scoped, tag = 'scoped memory for tpu_custom_call.1']
    %11 = vsyncpa [#allocation3], 0
    %12 = vsyncpa [#allocation6], 0
    %13 = vsyncpa [#allocation9], 0
    %14 = vsyncpa [#allocation4], 0
    %15 = vsyncpa [#allocation12], 0
    // Predicated region
    $region2: #{tpu_custom_call.1} parent=1 // pred_check
      _
    $region3: #{tpu_custom_call.1} parent=1 // pred_check_branch
      %17 = sbr.rel (0) target = $region5
    $region4: #{tpu_custom_call.1} parent=1 // pred_region
      %s19 = ssub.s32 128, 128
      %20 = vsyncadd [#allocation3], %s19
      %s22 = sshll.u32 [#allocation2], 4
      %s23 = int_to_ptr.vmem [resolvable:$true] %s22
      %25 = dma.hbm_to_vmem [thread:$0]  %s0, 128, %s23, [#allocation3]
    $region5: #{tpu_custom_call.1} parent=1 // pred_fallthru
      _
    // Predicated region
    $region6: #{tpu_custom_call.1} parent=1 // pred_check
      _
    $region7: #{tpu_custom_call.1} parent=1 // pred_check_branch
      %27 = sbr.rel (0) target = $region9
    $region8: #{tpu_custom_call.1} parent=1 // pred_region
      %s29 = ssub.s32 128, 128
      %30 = vsyncadd [#allocation6], %s29
      %s32 = sshll.u32 [#allocation5], 4
      %s33 = int_to_ptr.vmem [resolvable:$true] %s32
      %35 = dma.hbm_to_vmem [thread:$0]  %s1, 128, %s33, [#allocation6]
    $region9: #{tpu_custom_call.1} parent=1 // pred_fallthru
      _
    // Predicated region
    $region10: #{tpu_custom_call.1} parent=1 // pred_check
      _
    $region11: #{tpu_custom_call.1} parent=1 // pred_check_branch
      %37 = sbr.rel (0) target = $region13
    $region12: #{tpu_custom_call.1} parent=1 // pred_region
      %s39 = ssub.s32 128, 128
      %40 = vsyncadd [#allocation6], %s39
      %s42 = sshll.u32 [#allocation7], 4
      %s43 = int_to_ptr.vmem [resolvable:$true] %s42
      %45 = dma.hbm_to_vmem [thread:$0]  %s2, 128, %s43, [#allocation6]
    $region13: #{tpu_custom_call.1} parent=1 // pred_fallthru
      _
    // Predicated region
    $region14: #{tpu_custom_call.1} parent=1 // pred_check
      _
    $region15: #{tpu_custom_call.1} parent=1 // pred_check_branch
      %47 = sbr.rel (0) target = $region17
    $region16: #{tpu_custom_call.1} parent=1 // pred_region
      %s49 = ssub.s32 128, 128
      %50 = vsyncadd [#allocation9], %s49
      %s52 = sshll.u32 [#allocation8], 4
      %s53 = int_to_ptr.vmem [resolvable:$true] %s52
      %55 = dma.hbm_to_vmem [thread:$0]  %s3, 128, %s53, [#allocation9]
    $region17: #{tpu_custom_call.1} parent=1 // pred_fallthru
      _
    // Predicated region
    $region18: #{tpu_custom_call.1} parent=1 // pred_check
      _
    $region19: #{tpu_custom_call.1} parent=1 // pred_check_branch
      %57 = sbr.rel (0) target = $region21
    $region20: #{tpu_custom_call.1} parent=1 // pred_region
      %58 = dma.done [#allocation3], 128
    $region21: #{tpu_custom_call.1} parent=1 // pred_fallthru
      _
    // Predicated region
    $region22: #{tpu_custom_call.1} parent=1 // pred_check
      _
    $region23: #{tpu_custom_call.1} parent=1 // pred_check_branch
      %60 = sbr.rel (0) target = $region25
    $region24: #{tpu_custom_call.1} parent=1 // pred_region
      %61 = dma.done [#allocation6], 128
    $region25: #{tpu_custom_call.1} parent=1 // pred_fallthru
      _
    // Predicated region
    $region26: #{tpu_custom_call.1} parent=1 // pred_check
      _
    $region27: #{tpu_custom_call.1} parent=1 // pred_check_branch
      %63 = sbr.rel (0) target = $region29
    $region28: #{tpu_custom_call.1} parent=1 // pred_region
      %64 = dma.done [#allocation6], 128
    $region29: #{tpu_custom_call.1} parent=1 // pred_fallthru
      _
    // Predicated region
    $region30: #{tpu_custom_call.1} parent=1 // pred_check
      _
    $region31: #{tpu_custom_call.1} parent=1 // pred_check_branch
      %66 = sbr.rel (0) target = $region33
    $region32: #{tpu_custom_call.1} parent=1 // pred_region
      %67 = dma.done [#allocation9], 128
    $region33: #{tpu_custom_call.1} parent=1 // pred_fallthru
      _
    %p68 = scmp.eq.s32.totalorder 0, 0
    // Predicated region
    $region34: #{tpu_custom_call.1} parent=1 // pred_check
      %p69 = pneg %p68
    $region35: #{tpu_custom_call.1} parent=1 // pred_check_branch
      %71 = sbr.rel (%p69) target = $region37
    $region36: #{tpu_custom_call.1} parent=1 // pred_region
      %vm72 = vcmask 0
      %73 = vst.msk [vmem:[#allocation10] sm:$0x1] %vm72, 0.0
      %74 = vst.msk [vmem:[#allocation11] sm:$0x1] %vm72, 0.0
    $region37: #{tpu_custom_call.1} parent=1 // pred_fallthru
      _
    %s75 = smul.u32 0, 8
    %v76 = vlaneseq
    %v77 = vshrl.u32 %v76, 7
    %v78 = vstv %s75
    %v79 = vadd.s32 %v78, %v77
    %vm80 = vcmp.lt.s32.totalorder %v79, 8
    %v81 = vsel %vm80, 1, 0
    %v82 = vcvt.s32.f32 %v81
    %v83 = vld [vmem:[#allocation2] sm:$0xff]
    %vm84 = vcmp.eq.s32.totalorder %v81, 1
    %v85 = vsel %vm84, %v83, 0.0
    %v86 = vmul.f32 %v85, 0.75
    %v87 = vld [vmem:[#allocation5] sm:$0xff]
    %v88 = vsel %vm84, %v87, 0.0
    %v89 = vmul.f32 %v88, 0.75
    %vm90 = vcmask 261120
    %v91 = vsel %vm90, %v86, -inf
    %92 = vmax.xlane.f32.xlu0 %v91
    %v93 = vpop.xlane.xlu0 %92
    %v94 = vsub.f32 %v86, %v93
    %v95 = vsel %vm90, %v89, -inf
    %96 = vmax.xlane.f32.xlu0 %v95
    %v97 = vpop.xlane.xlu0 %96
    %v98 = vsub.f32 %v89, %v97
    %v99 = vmul.f32 %v94, 1.442695
    %v100 = vpow.pop %v99
    %v101 = vsel %vm90, %v100, 0.0
    %102 = vadd.xlane.f32.xlu0 %v101
    %v103 = vpop.xlane.xlu0 %102
    %v104 = vmul.f32 %v98, 1.442695
    %v105 = vpow.pop %v104
    %v106 = vsel %vm90, %v105, 0.0
    %107 = vadd.xlane.f32.xlu0 %v106
    %v108 = vpop.xlane.xlu0 %107
    %v109 = vsub.f32 %v98, %v94
    %v110 = vmul.f32 %v105, %v109
    %v111 = vsel %vm90, %v110, 0.0
    %112 = vadd.xlane.f32.xlu0 %v111
    %v113 = vpop.xlane.xlu0 %112
    %v114 = vrcp.pop %v108
    %v115 = vmul.f32 %v113, %v114
    %v116 = vmul.f32 %v103, %v114
    %v117 = vlog2.pop %v116
    %v118 = vmul.f32 %v117, 0.6931472
    %v119 = vadd.f32 %v115, %v118
    %v120 = vmul.f32 %v119, %v82
    %v121 = vrot.slane %v120, 4
    %v122 = vadd.f32 %v120, %v121
    %v123 = vrot.slane %v122, 2
    %v124 = vadd.f32 %v122, %v123
    %v125 = vrot.slane %v124, 1
    %v126 = vadd.f32 %v124, %v125
    %v127 = vld [vmem:[#allocation7] sm:$0xff]
    %v128 = vsel %vm84, %v127, 0.0
    %v129 = vld [vmem:[#allocation8] sm:$0xff]
    %v130 = vsel %vm84, %v129, 0.0
    %v131 = vmul.f32 %v128, %v130
    %vm132 = vcmask 523264
    %v133 = vsel %vm132, %v131, 0.0
    %134 = vadd.xlane.f32.xlu0 %v133
    %v135 = vpop.xlane.xlu0 %134
    %v136 = vmul.f32 %v128, %v128
    %v137 = vsel %vm132, %v136, 0.0
    %138 = vadd.xlane.f32.xlu0 %v137
    %v139 = vpop.xlane.xlu0 %138
    %v140 = vrsqrt.pop %v139
    %v141 = vmul.f32 %v139, %v140
    %vm142 = vcmp.eq.f32.partialorder %v139, inf
    %v143 = vsel %vm142, %v139, %v141
    %vm144 = vcmp.eq.f32.partialorder %v139, 0.0
    %v145 = vand.u32 %v139, 2147483648
    %v146 = vsel %vm144, %v145, %v143
    %v147 = vmul.f32 %v130, %v130
    %v148 = vsel %vm132, %v147, 0.0
    %149 = vadd.xlane.f32.xlu0 %v148
    %v150 = vpop.xlane.xlu0 %149
    %v151 = vrsqrt.pop %v150
    %v152 = vmul.f32 %v150, %v151
    %vm153 = vcmp.eq.f32.partialorder %v150, inf
    %v154 = vsel %vm153, %v150, %v152
    %vm155 = vcmp.eq.f32.partialorder %v150, 0.0
    %v156 = vand.u32 %v150, 2147483648
    %v157 = vsel %vm155, %v156, %v154
    %v158 = vmax.f32 %v146, 1e-08
    %v159 = vmax.f32 %v157, 1e-08
    %v160 = vmul.f32 %v158, %v159
    %v161 = vrcp.pop %v160
    %v162 = vmul.f32 %v135, %v161
    %v163 = vmul.f32 %v162, %v82
    %v164 = vrot.slane %v163, 4
    %v165 = vadd.f32 %v163, %v164
    %v166 = vrot.slane %v165, 2
    %v167 = vadd.f32 %v165, %v166
    %v168 = vrot.slane %v167, 1
    %v169 = vadd.f32 %v167, %v168
    %v170 = vld [vmem:[#allocation10] sm:$0x1]
    %v171 = vadd.f32 %v170, %v126
    %vm172 = vcmask 0
    %173 = vst.msk [vmem:[#allocation10] sm:$0x1] %vm172, %v171
    %v174 = vld [vmem:[#allocation11] sm:$0x1]
    %v175 = vadd.f32 %v174, %v169
    %176 = vst.msk [vmem:[#allocation11] sm:$0x1] %vm172, %v175
    // Predicated region
    $region38: #{tpu_custom_call.1} parent=1 // pred_check
      _
    $region39: #{tpu_custom_call.1} parent=1 // pred_check_branch
      %178 = sbr.rel (0) target = $region41
    $region40: #{tpu_custom_call.1} parent=1 // pred_region
      %s180 = ssub.s32 16, 16
      %181 = vsyncadd [#allocation4], %s180
      %s183 = sshll.u32 [#allocation10], 4
      %s184 = int_to_ptr.vmem [resolvable:$true] %s183
      %186 = dma.vmem_to_hbm [thread:$0]  %s184, 16, %s4, [#allocation4]
    $region41: #{tpu_custom_call.1} parent=1 // pred_fallthru
      _
    // Predicated region
    $region42: #{tpu_custom_call.1} parent=1 // pred_check
      _
    $region43: #{tpu_custom_call.1} parent=1 // pred_check_branch
      %188 = sbr.rel (0) target = $region45
    $region44: #{tpu_custom_call.1} parent=1 // pred_region
      %s190 = ssub.s32 16, 16
      %191 = vsyncadd [#allocation12], %s190
      %s193 = sshll.u32 [#allocation11], 4
      %s194 = int_to_ptr.vmem [resolvable:$true] %s193
      %196 = dma.vmem_to_hbm [thread:$0]  %s194, 16, %s5, [#allocation12]
    $region45: #{tpu_custom_call.1} parent=1 // pred_fallthru
      _
    // Predicated region
    $region46: #{tpu_custom_call.1} parent=1 // pred_check
      _
    $region47: #{tpu_custom_call.1} parent=1 // pred_check_branch
      %198 = sbr.rel (0) target = $region49
    $region48: #{tpu_custom_call.1} parent=1 // pred_region
      %199 = dma.done [#allocation4], 16
    $region49: #{tpu_custom_call.1} parent=1 // pred_fallthru
      _
    // Predicated region
    $region50: #{tpu_custom_call.1} parent=1 // pred_check
      _
    $region51: #{tpu_custom_call.1} parent=1 // pred_check_branch
      %201 = sbr.rel (0) target = $region53
    $region52: #{tpu_custom_call.1} parent=1 // pred_region
      %202 = dma.done [#allocation12], 16
    $region53: #{tpu_custom_call.1} parent=1 // pred_fallthru
      _
    %203 = vsyncpa [#allocation3], 1
    %204 = vsyncpa [#allocation6], 1
    %205 = vsyncpa [#allocation9], 1
    %206 = vsyncpa [#allocation4], 1
    %207 = vsyncpa [#allocation12], 1

</llo_original>
